<compile_context>
chip_gen: v7x
topology: tpu7x:2x2x1
jax: 0.10.0
libtpu: 0.0.40
codegen_flags: <defaults>
</compile_context>

<pallas_src>
import jax
import jax.numpy as jnp
from jax.experimental import pallas as pl
from jax.experimental.pallas import tpu as pltpu


def net_kernel(xt_ref, w1t_ref, b1_ref, w2t_ref, b2_ref, o_ref):
    # xt_ref: (F, Bt)  w1t_ref: (H, F)  b1_ref: (H, 1)  w2t_ref: (O, H)  b2_ref: (O, 1)
    xt = xt_ref[...]
    w1t = w1t_ref[...]
    n_feat = xt.shape[0]

    # ---- hidden layer: relu(W1^T x + b1) ----
    if n_feat <= 8:
        # Tiny contraction: VPU outer-product FMAs, keeps the MXU out of the path.
        h = w1t[:, 0:1] * xt[0:1, :]
        for f in range(1, n_feat):
            h = h + w1t[:, f : f + 1] * xt[f : f + 1, :]
    else:
        h = jnp.dot(w1t, xt, preferred_element_type=jnp.float32)
    h = jnp.maximum(h + b1_ref[...], 0.0)  # (H, Bt)

    # ---- output layer: softmax(W2^T h + b2) over the O axis (sublanes) ----
    logits = (
        jnp.dot(w2t_ref[...], h, preferred_element_type=jnp.float32) + b2_ref[...]
    )  # (O, Bt)

    n_out = logits.shape[0]
    if n_out == 2:
        # 2-class softmax: pure elementwise ops on the two sublane rows.
        m = jnp.maximum(logits[0:1, :], logits[1:2, :])
        e = jnp.exp(logits - m)
        denom = e[0:1, :] + e[1:2, :]
    else:
        m = jnp.max(logits, axis=0, keepdims=True)
        e = jnp.exp(logits - m)
        denom = jnp.sum(e, axis=0, keepdims=True)

    o_ref[...] = (e * pl.reciprocal(denom, approx=True)).astype(o_ref.dtype)


def net_forward(x, w1, b1, w2, b2, *, tile_b=None):
    """x: (B, F), w1: (F, H), b1: (1, H) or (H,), w2: (H, O), b2: (1, O) or (O,).
    Returns softmax probabilities of shape (B, O)."""
    B, F = x.shape
    H = w1.shape[1]
    O = w2.shape[1]
    if tile_b is None:
        tile_b = B  # single grid step: best on v5e/v6e; use B//2 on v7x for 2 TCs
    assert B % tile_b == 0, "batch must be a multiple of the batch tile"
    assert tile_b == B or tile_b % 128 == 0, "batch tile must be lane-aligned (x128)"

    # Batch-on-lanes layout (lane-dense input DMA and output stores).
    xt = x.T                    # (F, B)
    w1t = w1.T                  # (H, F)
    b1t = b1.reshape(H, 1)      # (H, 1)
    w2t = w2.T                  # (O, H)
    b2t = b2.reshape(O, 1)      # (O, 1)

    grid = (B // tile_b,)
    out_t = pl.pallas_call(
        net_kernel,
        out_shape=jax.ShapeDtypeStruct((O, B), jnp.float32),
        grid_spec=pltpu.PrefetchScalarGridSpec(
            num_scalar_prefetch=0,
            grid=grid,
            in_specs=[
                pl.BlockSpec((F, tile_b), lambda i: (0, i)),  # x^T tile (lanes = batch)
                pl.BlockSpec((H, F), lambda i: (0, 0)),       # W1^T (resident)
                pl.BlockSpec((H, 1), lambda i: (0, 0)),       # b1
                pl.BlockSpec((O, H), lambda i: (0, 0)),       # W2^T (resident)
                pl.BlockSpec((O, 1), lambda i: (0, 0)),       # b2
            ],
            out_specs=pl.BlockSpec((O, tile_b), lambda i: (0, i)),
        ),
        compiler_params=pltpu.CompilerParams(dimension_semantics=("parallel",)),
    )(xt, w1t, b1t, w2t, b2t)
    return out_t.T  # back to (B, O) to match the PyTorch module's output


if __name__ == "__main__":
    # Shapes consistent with the script: Net(n_feature=2, n_hidden=32, n_output=2)
    n_feature, n_hidden, n_output = 2, 32, 2
    batch = 256

    key = jax.random.PRNGKey(0)
    k_x0, k_x1, k_w1, k_b1, k_w2, k_b2 = jax.random.split(key, 6)

    # Synthetic two-cluster input like the script (torch.normal(±2, 1))
    x0 = 2.0 + jax.random.normal(k_x0, (batch // 2, n_feature), dtype=jnp.float32)
    x1 = -2.0 + jax.random.normal(k_x1, (batch // 2, n_feature), dtype=jnp.float32)
    x = jnp.concatenate([x0, x1], axis=0)

    # Deterministic parameter init (uniform, à la torch.nn.Linear default)
    def linear_init(kw, kb, fan_in, fan_out):
        bound = 1.0 / jnp.sqrt(jnp.float32(fan_in))
        w = jax.random.uniform(kw, (fan_in, fan_out), jnp.float32, -bound, bound)
        b = jax.random.uniform(kb, (1, fan_out), jnp.float32, -bound, bound)
        return w, b

    w1, b1 = linear_init(k_w1, k_b1, n_feature, n_hidden)
    w2, b2 = linear_init(k_w2, k_b2, n_hidden, n_output)

    out = net_forward(x, w1, b1, w2, b2)
    jax.block_until_ready(out)

    # Sanity check against plain-JAX reference (tolerance relaxed for approx vrcp)
    h_ref = jnp.maximum(x @ w1 + b1, 0.0)
    ref = jax.nn.softmax(h_ref @ w2 + b2, axis=-1)
    assert out.shape == (batch, n_output)
    assert jnp.allclose(out, ref, atol=1e-3, rtol=1e-3)
    print("KERNEL_OK")
</pallas_src>

<mosaic_0001>
module attributes {stable_mosaic.version = 11 : i64} {
  func.func @net_kernel(%arg0: i32, %arg1: memref<2x256xf32, #tpu.memory_space<vmem>>, %arg2: memref<32x2xf32, #tpu.memory_space<vmem>>, %arg3: memref<32x1xf32, #tpu.memory_space<vmem>>, %arg4: memref<2x32xf32, #tpu.memory_space<vmem>>, %arg5: memref<2x1xf32, #tpu.memory_space<vmem>>, %arg6: memref<2x256xf32, #tpu.memory_space<vmem>>) attributes {dimension_semantics = [#tpu.dimension_semantics<parallel>], iteration_bounds = array<i64: 1>, scalar_prefetch = 0 : i64, scratch_operands = 0 : i64, tpu.core_type = #tpu.core_type<tc>, window_params = [{transform_indices = @transform_0, window_bounds = array<i64: 2, 256>}, {pipeline_mode = #tpu.pipeline_mode<synchronous>, transform_indices = @transform_1, window_bounds = array<i64: 32, 2>}, {pipeline_mode = #tpu.pipeline_mode<synchronous>, transform_indices = @transform_2, window_bounds = array<i64: 32, 1>}, {pipeline_mode = #tpu.pipeline_mode<synchronous>, transform_indices = @transform_3, window_bounds = array<i64: 2, 32>}, {pipeline_mode = #tpu.pipeline_mode<synchronous>, transform_indices = @transform_4, window_bounds = array<i64: 2, 1>}, {transform_indices = @transform_5, window_bounds = array<i64: 2, 256>}]} {
    %c0 = arith.constant 0 : index
    %c0_0 = arith.constant 0 : index
    %0 = vector.load %arg1[%c0, %c0_0] : memref<2x256xf32, #tpu.memory_space<vmem>>, vector<2x256xf32>
    %c0_1 = arith.constant 0 : index
    %c0_2 = arith.constant 0 : index
    %1 = vector.load %arg2[%c0_1, %c0_2] : memref<32x2xf32, #tpu.memory_space<vmem>>, vector<32x2xf32>
    %2 = vector.extract_strided_slice %1 {offsets = [0, 0], sizes = [32, 1], strides = [1, 1]} : vector<32x2xf32> to vector<32x1xf32>
    %3 = vector.extract_strided_slice %0 {offsets = [0, 0], sizes = [1, 256], strides = [1, 1]} : vector<2x256xf32> to vector<1x256xf32>
    %4 = vector.broadcast %2 : vector<32x1xf32> to vector<32x256xf32>
    %5 = vector.broadcast %3 : vector<1x256xf32> to vector<32x256xf32>
    %6 = arith.mulf %4, %5 : vector<32x256xf32>
    %7 = vector.extract_strided_slice %1 {offsets = [0, 1], sizes = [32, 1], strides = [1, 1]} : vector<32x2xf32> to vector<32x1xf32>
    %8 = vector.extract_strided_slice %0 {offsets = [1, 0], sizes = [1, 256], strides = [1, 1]} : vector<2x256xf32> to vector<1x256xf32>
    %9 = vector.broadcast %7 : vector<32x1xf32> to vector<32x256xf32>
    %10 = vector.broadcast %8 : vector<1x256xf32> to vector<32x256xf32>
    %11 = arith.mulf %9, %10 : vector<32x256xf32>
    %12 = arith.addf %6, %11 : vector<32x256xf32>
    %c0_3 = arith.constant 0 : index
    %c0_4 = arith.constant 0 : index
    %13 = vector.load %arg3[%c0_3, %c0_4] : memref<32x1xf32, #tpu.memory_space<vmem>>, vector<32x1xf32>
    %14 = vector.broadcast %13 : vector<32x1xf32> to vector<32x256xf32>
    %15 = arith.addf %12, %14 : vector<32x256xf32>
    %cst = arith.constant 0.000000e+00 : f32
    %16 = vector.broadcast %cst : f32 to vector<32x256xf32>
    %17 = arith.maximumf %15, %16 : vector<32x256xf32>
    %c0_5 = arith.constant 0 : index
    %c0_6 = arith.constant 0 : index
    %18 = vector.load %arg4[%c0_5, %c0_6] : memref<2x32xf32, #tpu.memory_space<vmem>>, vector<2x32xf32>
    %cst_7 = arith.constant dense<0.000000e+00> : vector<2x256xf32>
    %19 = tpu.matmul %18, %17, %cst_7 {dimension_numbers = #tpu.dot_dimension_numbers<[1], [0], [0], [1], [0, 0, 1, 1], [], []>} : vector<2x32xf32>, vector<32x256xf32>, vector<2x256xf32> -> vector<2x256xf32>
    %c0_8 = arith.constant 0 : index
    %c0_9 = arith.constant 0 : index
    %20 = vector.load %arg5[%c0_8, %c0_9] : memref<2x1xf32, #tpu.memory_space<vmem>>, vector<2x1xf32>
    %21 = vector.broadcast %20 : vector<2x1xf32> to vector<2x256xf32>
    %22 = arith.addf %19, %21 : vector<2x256xf32>
    %23 = vector.extract_strided_slice %22 {offsets = [0, 0], sizes = [1, 256], strides = [1, 1]} : vector<2x256xf32> to vector<1x256xf32>
    %24 = vector.extract_strided_slice %22 {offsets = [1, 0], sizes = [1, 256], strides = [1, 1]} : vector<2x256xf32> to vector<1x256xf32>
    %25 = arith.maximumf %23, %24 : vector<1x256xf32>
    %26 = vector.broadcast %25 : vector<1x256xf32> to vector<2x256xf32>
    %27 = arith.subf %22, %26 : vector<2x256xf32>
    %28 = math.exp %27 : vector<2x256xf32>
    %29 = vector.extract_strided_slice %28 {offsets = [0, 0], sizes = [1, 256], strides = [1, 1]} : vector<2x256xf32> to vector<1x256xf32>
    %30 = vector.extract_strided_slice %28 {offsets = [1, 0], sizes = [1, 256], strides = [1, 1]} : vector<2x256xf32> to vector<1x256xf32>
    %31 = arith.addf %29, %30 : vector<1x256xf32>
    %32 = tpu.reciprocal %31 {approx = true} : vector<1x256xf32> -> vector<1x256xf32>
    %33 = vector.broadcast %32 : vector<1x256xf32> to vector<2x256xf32>
    %34 = arith.mulf %28, %33 : vector<2x256xf32>
    %c0_10 = arith.constant 0 : index
    %c0_11 = arith.constant 0 : index
    %35 = vector.load %arg6[%c0_10, %c0_11] : memref<2x256xf32, #tpu.memory_space<vmem>>, vector<2x256xf32>
    tpu.vector_store %arg6[%c0_10, %c0_11], %34 {strides = array<i32>} : memref<2x256xf32, #tpu.memory_space<vmem>>, vector<2x256xf32>,
    return
  }
  func.func @transform_0(%arg0: i32) -> (i32, i32) {
    %c0_i32 = arith.constant 0 : i32
    %c0_i32_0 = arith.constant 0 : i32
    return %c0_i32, %arg0 : i32, i32
  }
  func.func @transform_1(%arg0: i32) -> (i32, i32) {
    %c0_i32 = arith.constant 0 : i32
    %c0_i32_0 = arith.constant 0 : i32
    %c0_i32_1 = arith.constant 0 : i32
    return %c0_i32, %c0_i32_0 : i32, i32
  }
  func.func @transform_2(%arg0: i32) -> (i32, i32) {
    %c0_i32 = arith.constant 0 : i32
    %c0_i32_0 = arith.constant 0 : i32
    %c0_i32_1 = arith.constant 0 : i32
    return %c0_i32, %c0_i32_0 : i32, i32
  }
  func.func @transform_3(%arg0: i32) -> (i32, i32) {
    %c0_i32 = arith.constant 0 : i32
    %c0_i32_0 = arith.constant 0 : i32
    %c0_i32_1 = arith.constant 0 : i32
    return %c0_i32, %c0_i32_0 : i32, i32
  }
  func.func @transform_4(%arg0: i32) -> (i32, i32) {
    %c0_i32 = arith.constant 0 : i32
    %c0_i32_0 = arith.constant 0 : i32
    %c0_i32_1 = arith.constant 0 : i32
    return %c0_i32, %c0_i32_0 : i32, i32
  }
  func.func @transform_5(%arg0: i32) -> (i32, i32) {
    %c0_i32 = arith.constant 0 : i32
    %c0_i32_0 = arith.constant 0 : i32
    return %c0_i32, %arg0 : i32, i32
  }
}

</mosaic_0001>

<llo_original>
// kernel: tpu_custom_call.1
$region0: #{tpu_custom_call.1}
  #allocation0 [shape = 'u32[]', space=smem, size = 0x4, offset = 0x4, fixed_abs, tag = 'smem constant byte address 0x4 - core index']
  #allocation1 [shape = 'u32[144,128]{1,0:T(1,128)}', space=vmem, size = 0x12000, scoped, tag = 'internal scratch']
  %s0 = inlined_call_operand.vmem [shape: f32[2,256], index: 0, kind: input, shape index: {}]
  %s1 = inlined_call_operand.vmem [shape: f32[32,2], index: 1, kind: input, shape index: {}]
  %s2 = inlined_call_operand.vmem [shape: f32[32,1], index: 2, kind: input, shape index: {}]
  %s3 = inlined_call_operand.vmem [shape: f32[2,32], index: 3, kind: input, shape index: {}]
  %s4 = inlined_call_operand.vmem [shape: f32[2,1], index: 4, kind: input, shape index: {}]
  %s5 = inlined_call_operand.hbm [shape: f32[2,256], index: 5, kind: output, shape index: {}]
  %s6 = sld [smem:[#allocation0]]
  $region30: #{tpu_custom_call.1} parent=0
    _
  %s8 = ssub.s32 1, %s6
  %s9 = scalar_select 0, %s8, %s6
  $region1: #{tpu_custom_call.1} parent=0
    #allocation2 [shape = 'u8[2048]{0}', space=vmem, size = 0x800, scoped, tag = 'output window, operand 0, single buffered']
    #allocation3 [shape = 's32[1]{0}', space=sflag, size = 0x4, scoped, tag = 'scoped memory for tpu_custom_call.1']
    %10 = vsyncpa [#allocation3], 0
    // Predicated region
    $region2: #{tpu_custom_call.1} parent=1 // pred_check
      _
    $region3: #{tpu_custom_call.1} parent=1 // pred_check_branch
      %12 = sbr.rel (0) target = $region5
    $region4: #{tpu_custom_call.1} parent=1 // pred_region
      _
    $region5: #{tpu_custom_call.1} parent=1 // pred_fallthru
      _
    // Predicated region
    $region6: #{tpu_custom_call.1} parent=1 // pred_check
      _
    $region7: #{tpu_custom_call.1} parent=1 // pred_check_branch
      %14 = sbr.rel (0) target = $region9
    $region8: #{tpu_custom_call.1} parent=1 // pred_region
      _
    $region9: #{tpu_custom_call.1} parent=1 // pred_fallthru
      _
    // Predicated region
    $region10: #{tpu_custom_call.1} parent=1 // pred_check
      _
    $region11: #{tpu_custom_call.1} parent=1 // pred_check_branch
      %16 = sbr.rel (0) target = $region13
    $region12: #{tpu_custom_call.1} parent=1 // pred_region
      _
    $region13: #{tpu_custom_call.1} parent=1 // pred_fallthru
      _
    // Predicated region
    $region14: #{tpu_custom_call.1} parent=1 // pred_check
      _
    $region15: #{tpu_custom_call.1} parent=1 // pred_check_branch
      %18 = sbr.rel (0) target = $region17
    $region16: #{tpu_custom_call.1} parent=1 // pred_region
      _
    $region17: #{tpu_custom_call.1} parent=1 // pred_fallthru
      _
    // Predicated region
    $region18: #{tpu_custom_call.1} parent=1 // pred_check
      _
    $region19: #{tpu_custom_call.1} parent=1 // pred_check_branch
      %20 = sbr.rel (0) target = $region21
    $region20: #{tpu_custom_call.1} parent=1 // pred_region
      _
    $region21: #{tpu_custom_call.1} parent=1 // pred_fallthru
      _
    %v21 = vld [vmem:[%s0] sm:$0xf]
    %v22 = vld [vmem:[%s1] sm:$0xff]
    %v23 = vld [vmem:[%s1 + $0x8] sm:$0xff]
    %v24 = vld [vmem:[%s1 + $0x10] sm:$0xff]
    %v25 = vld [vmem:[%s1 + $0x18] sm:$0xff]
    %27 = vset.pattern.permute.xlu0 0
    %28 = vperm.xlu0 %27, %v22
    %v29 = vpop.permute.xlu0 %28
    %32 = vset.pattern.permute.xlu0 0
    %33 = vperm.xlu0 %32, %v23
    %v34 = vpop.permute.xlu0 %33
    %37 = vset.pattern.permute.xlu0 0
    %38 = vperm.xlu0 %37, %v24
    %v39 = vpop.permute.xlu0 %38
    %42 = vset.pattern.permute.xlu0 0
    %43 = vperm.xlu0 %42, %v25
    %v44 = vpop.permute.xlu0 %43
    %v47 = vlaneseq
    %v48 = vshrl.u32 %v47, 7
    %v49 = vsub.s32 0, %v48
    %v50 = vrot.slane %v21, %v49
    %v51 = vlaneseq
    %v52 = vshrl.u32 %v51, 7
    %v53 = vsub.s32 2, %v52
    %v54 = vrot.slane %v21, %v53
    %v57 = vlaneseq
    %v58 = vshrl.u32 %v57, 7
    %v59 = vsub.s32 0, %v58
    %v60 = vrot.slane %v50, %v59
    %v61 = vlaneseq
    %v62 = vshrl.u32 %v61, 7
    %v63 = vsub.s32 0, %v62
    %v64 = vrot.slane %v54, %v63
    %v65 = vmul.f32 %v29, %v60
    %v66 = vmul.f32 %v29, %v64
    %v67 = vmul.f32 %v34, %v60
    %v68 = vmul.f32 %v34, %v64
    %v69 = vmul.f32 %v39, %v60
    %v70 = vmul.f32 %v39, %v64
    %v71 = vmul.f32 %v44, %v60
    %v72 = vmul.f32 %v44, %v64
    %73 = vset.pattern.permute.xlu0 1
    %74 = vperm.xlu0 %73, %v22
    %v75 = vpop.permute.xlu0 %74
    %77 = vset.pattern.permute.xlu0 1
    %78 = vperm.xlu0 %77, %v23
    %v79 = vpop.permute.xlu0 %78
    %81 = vset.pattern.permute.xlu0 1
    %82 = vperm.xlu0 %81, %v24
    %v83 = vpop.permute.xlu0 %82
    %85 = vset.pattern.permute.xlu0 1
    %86 = vperm.xlu0 %85, %v25
    %v87 = vpop.permute.xlu0 %86
    %v89 = vlaneseq
    %v90 = vshrl.u32 %v89, 7
    %v91 = vsub.s32 1, %v90
    %v92 = vrot.slane %v21, %v91
    %v93 = vlaneseq
    %v94 = vshrl.u32 %v93, 7
    %v95 = vsub.s32 3, %v94
    %v96 = vrot.slane %v21, %v95
    %v99 = vlaneseq
    %v100 = vshrl.u32 %v99, 7
    %v101 = vsub.s32 1, %v100
    %v102 = vrot.slane %v92, %v101
    %v103 = vlaneseq
    %v104 = vshrl.u32 %v103, 7
    %v105 = vsub.s32 1, %v104
    %v106 = vrot.slane %v96, %v105
    %v107 = vmul.f32 %v75, %v102
    %v108 = vmul.f32 %v75, %v106
    %v109 = vmul.f32 %v79, %v102
    %v110 = vmul.f32 %v79, %v106
    %v111 = vmul.f32 %v83, %v102
    %v112 = vmul.f32 %v83, %v106
    %v113 = vmul.f32 %v87, %v102
    %v114 = vmul.f32 %v87, %v106
    %v115 = vadd.f32 %v65, %v107
    %v116 = vadd.f32 %v66, %v108
    %v117 = vadd.f32 %v67, %v109
    %v118 = vadd.f32 %v68, %v110
    %v119 = vadd.f32 %v69, %v111
    %v120 = vadd.f32 %v70, %v112
    %v121 = vadd.f32 %v71, %v113
    %v122 = vadd.f32 %v72, %v114
    %v123 = vld [vmem:[%s2] sm:$0xff]
    %v124 = vld [vmem:[%s2 + $0x8] sm:$0xff]
    %v125 = vld [vmem:[%s2 + $0x10] sm:$0xff]
    %v126 = vld [vmem:[%s2 + $0x18] sm:$0xff]
    %128 = vset.pattern.permute.xlu0 0
    %129 = vperm.xlu0 %128, %v123
    %v130 = vpop.permute.xlu0 %129
    %133 = vset.pattern.permute.xlu0 0
    %134 = vperm.xlu0 %133, %v124
    %v135 = vpop.permute.xlu0 %134
    %138 = vset.pattern.permute.xlu0 0
    %139 = vperm.xlu0 %138, %v125
    %v140 = vpop.permute.xlu0 %139
    %143 = vset.pattern.permute.xlu0 0
    %144 = vperm.xlu0 %143, %v126
    %v145 = vpop.permute.xlu0 %144
    %v147 = vadd.f32 %v115, %v130
    %v148 = vadd.f32 %v116, %v130
    %v149 = vadd.f32 %v117, %v135
    %v150 = vadd.f32 %v118, %v135
    %v151 = vadd.f32 %v119, %v140
    %v152 = vadd.f32 %v120, %v140
    %v153 = vadd.f32 %v121, %v145
    %v154 = vadd.f32 %v122, %v145
    %v155 = vmax.f32 %v147, 0.0
    %v156 = vmax.f32 %v148, 0.0
    %v157 = vmax.f32 %v149, 0.0
    %v158 = vmax.f32 %v150, 0.0
    %v159 = vmax.f32 %v151, 0.0
    %v160 = vmax.f32 %v152, 0.0
    %v161 = vmax.f32 %v153, 0.0
    %v162 = vmax.f32 %v154, 0.0
    %v163 = vld [vmem:[%s3] sm:$0x3]
    %v164 = vld [vmem:[%s4] sm:$0x3]
    %166 = vset.pattern.permute.xlu0 0
    %167 = vperm.xlu0 %166, %v164
    %v168 = vpop.permute.xlu0 %167
    %vm170 = vcmask 261120
    %v172 = vsel %vm170, %v163, 0
    %174 = vmatprep.subr.mxu0 %v156
    %175 = vmatpush1.msra.mxu0 %v155
    %176 = vmatprep.subr.mxu0 %v158
    %177 = vmatpush1.msra.mxu0 %v157
    %178 = vmatprep.subr.mxu0 %v160
    %179 = vmatpush1.msra.mxu0 %v159
    %180 = vmatprep.subr.mxu0 %v162
    %181 = vmatpush1.msra.mxu0 %v161
    %182 = vmatprep.subr.mxu0 0.0
    %183 = vmatpush1.msra.mxu0 0.0
    %184 = vmatprep.subr.mxu0 0.0
    %185 = vmatpush1.msra.mxu0 0.0
    %186 = vmatprep.subr.mxu0 0.0
    %187 = vmatpush1.msra.mxu0 0.0
    %188 = vmatprep.subr.mxu0 0.0
    %189 = vmatpush1.msra.mxu0 0.0
    %190 = vmatprep.subr.mxu0 0.0
    %191 = vmatpush1.msra.mxu0 0.0
    %192 = vmatprep.subr.mxu0 0.0
    %193 = vmatpush1.msra.mxu0 0.0
    %194 = vmatprep.subr.mxu0 0.0
    %195 = vmatpush1.msra.mxu0 0.0
    %196 = vmatprep.subr.mxu0 0.0
    %197 = vmatpush1.msra.mxu0 0.0
    %198 = vmatprep.subr.mxu0 0.0
    %199 = vmatpush1.msra.mxu0 0.0
    %200 = vmatprep.subr.mxu0 0.0
    %201 = vmatpush1.msra.mxu0 0.0
    %202 = vmatprep.subr.mxu0 0.0
    %203 = vmatpush1.msra.mxu0 0.0
    %204 = vmatprep.subr.mxu0 0.0
    %205 = vmatpush1.msra.mxu0 0.0
    %206 = vmatprep.subr.mxu0 0.0
    %207 = vmatpush1.msra.mxu0 0.0
    %208 = vmatprep.subr.mxu0 0.0
    %209 = vmatpush1.msra.mxu0 0.0
    %210 = vmatprep.subr.mxu0 0.0
    %211 = vmatpush1.msra.mxu0 0.0
    %212 = vmatprep.subr.mxu0 0.0
    %213 = vmatpush1.msra.mxu0 0.0
    %214 = vmatprep.subr.mxu0 0.0
    %215 = vmatpush1.msra.mxu0 0.0
    %216 = vmatprep.subr.mxu0 0.0
    %217 = vmatpush1.msra.mxu0 0.0
    %218 = vmatprep.subr.mxu0 0.0
    %219 = vmatpush1.msra.mxu0 0.0
    %220 = vmatprep.subr.mxu0 0.0
    %221 = vmatpush1.msra.mxu0 0.0
    %222 = vmatprep.subr.mxu0 0.0
    %223 = vmatpush1.msra.mxu0 0.0
    %224 = vmatprep.subr.mxu0 0.0
    %225 = vmatpush1.msra.mxu0 0.0
    %226 = vmatprep.subr.mxu0 0.0
    %227 = vmatpush1.msra.mxu0 0.0
    %228 = vmatprep.subr.mxu0 0.0
    %229 = vmatpush1.msra.mxu0 0.0
    %230 = vmatprep.subr.mxu0 0.0
    %231 = vmatpush1.msra.mxu0 0.0
    %232 = vmatprep.subr.mxu0 0.0
    %233 = vmatpush1.msra.mxu0 0.0
    %234 = vmatprep.subr.mxu0 0.0
    %235 = vmatpush1.msra.mxu0 0.0
    %236 = vmatprep.subr.mxu0 0.0
    %237 = vmatpush1.msra.mxu0 0.0
    %238 = vmatprep.mubr.f32.mxu0 0.0
    %239 = vmatmul.mubr.f32.gmra.mrb[0].mxu0 %v172
    %v240 = vpop.f32.mrb[0].mxu0
    %v241 = vadd.f32 %v168, %v240
    %v242 = vpop.f32.mrb[0].mxu0
    %v243 = vadd.f32 %v168, %v242
    %244 = vdwg.mxu0
    %v247 = vrot.slane %v241, 1
    %v248 = vrot.slane %v243, 1
    %v251 = vmax.f32 %v241, %v247
    %v252 = vmax.f32 %v243, %v248
    %v253 = vlaneseq
    %v254 = vshrl.u32 %v253, 7
    %v255 = vsub.s32 0, %v254
    %v256 = vrot.slane %v251, %v255
    %v257 = vlaneseq
    %v258 = vshrl.u32 %v257, 7
    %v259 = vsub.s32 0, %v258
    %v260 = vrot.slane %v252, %v259
    %v261 = vsub.f32 %v241, %v256
    %v262 = vsub.f32 %v243, %v260
    %v263 = vmul.f32 %v261, 1.442695
    %v264 = vpow.pop %v263
    %v265 = vmul.f32 %v262, 1.442695
    %v266 = vpow.pop %v265
    %v269 = vrot.slane %v264, 1
    %v270 = vrot.slane %v266, 1
    %v273 = vadd.f32 %v264, %v269
    %v274 = vadd.f32 %v266, %v270
    %v275 = vrcp.pop %v273
    %v276 = vrcp.pop %v274
    %v277 = vlaneseq
    %v278 = vshrl.u32 %v277, 7
    %v279 = vsub.s32 0, %v278
    %v280 = vrot.slane %v275, %v279
    %v281 = vlaneseq
    %v282 = vshrl.u32 %v281, 7
    %v283 = vsub.s32 0, %v282
    %v284 = vrot.slane %v276, %v283
    %v285 = vmul.f32 %v264, %v280
    %v286 = vmul.f32 %v266, %v284
    %v289 = vcombine.low %v285, %v286
    %v291 = vunpack.c.l.s4 1983009808
    %v292 = vunpack.c.0.s8 %v291
    %v293 = vlaneseq
    %v294 = vshrl.u32 %v293, 7
    %v295 = vsub.s32 %v292, %v294
    %v296 = vrot.slane %v289, %v295
    %298 = vst [vmem:[#allocation2] sm:$0xf] %v296
    // Predicated region
    $region22: #{tpu_custom_call.1} parent=1 // pred_check
      _
    $region23: #{tpu_custom_call.1} parent=1 // pred_check_branch
      %300 = sbr.rel (0) target = $region25
    $region24: #{tpu_custom_call.1} parent=1 // pred_region
      %s302 = ssub.s32 64, 64
      %303 = vsyncadd [#allocation3], %s302
      %s305 = sshll.u32 [#allocation2], 4
      %s306 = int_to_ptr.vmem [resolvable:$true] %s305
      %308 = dma.vmem_to_hbm [thread:$0]  %s306, 64, %s5, [#allocation3]
    $region25: #{tpu_custom_call.1} parent=1 // pred_fallthru
      _
    // Predicated region
    $region26: #{tpu_custom_call.1} parent=1 // pred_check
      _
    $region27: #{tpu_custom_call.1} parent=1 // pred_check_branch
      %310 = sbr.rel (0) target = $region29
    $region28: #{tpu_custom_call.1} parent=1 // pred_region
      %311 = dma.done [#allocation3], 64
    $region29: #{tpu_custom_call.1} parent=1 // pred_fallthru
      _
    %312 = vsyncpa [#allocation3], 1

</llo_original>
